<compile_context>
chip_gen: v7x
topology: tpu7x:2x2x1
jax: 0.10.0
libtpu: 0.0.40
codegen_flags: <defaults>
</compile_context>

<pallas_src>
import jax
import jax.numpy as jnp
from jax.experimental import pallas as pl
from jax.experimental.pallas import tpu as pltpu


def _round_up(x, m):
    return (x + m - 1) // m * m


def _patch_embed_kernel(x_ref, w_ref, b_ref, o_ref):
    # x_ref: (tm, K) bf16 patch tile (streamed per grid step)
    # w_ref: (K, D)  bf16 weight (VMEM-resident, constant index_map)
    # b_ref: (1, D)  f32 bias    (VMEM-resident, constant index_map)
    # o_ref: (tm, D) output tile
    acc = jnp.dot(x_ref[...], w_ref[...], preferred_element_type=jnp.float32)
    o_ref[...] = (acc + b_ref[...]).astype(o_ref.dtype)


def make_patch_forward(x, weight, bias, patch_size, *,
                       compute_dtype=jnp.bfloat16,
                       out_dtype=jnp.bfloat16,
                       tm_target=1024):
    """x: (B, 3, H, W) NCHW. weight: (D, 3, P, P). bias: (D,). -> (B, N, D)."""
    B, C, H, W = x.shape
    D = weight.shape[0]
    P = patch_size
    assert H % P == 0 and W % P == 0
    nh, nw = H // P, W // P
    N = nh * nw
    K = C * P * P
    M = B * N
    out_dtype = x.dtype if out_dtype is None else out_dtype

    # --- glue: extract non-overlapping patches, flattened in (c, kh, kw) order
    #     (matches Conv2d weight layout (D, C, P, P)); cast to bf16 so the
    #     materialized patch matrix costs half the HBM bytes.  No padding.
    patches = x.reshape(B, C, nh, P, nw, P)
    patches = jnp.transpose(patches, (0, 2, 4, 1, 3, 5)).reshape(M, K)
    patches = patches.astype(compute_dtype)

    # --- glue: conv weight (D, C, P, P) -> (K, D) bf16; bias -> (1, D) f32.
    w_mat = weight.reshape(D, K).T.astype(compute_dtype)
    b_mat = bias.astype(jnp.float32).reshape(1, D)

    # 1-D grid over M only; weight/bias resident, output full-D per step.
    tm = min(tm_target, _round_up(M, 8))
    grid = (pl.cdiv(M, tm),)

    # VMEM budget: double-buffered patch + output tiles, resident weight/bias
    # (Pallas still allocates 2 buffers for them), plus headroom; clamp to
    # 48 MiB so Mosaic keeps scratch room on v7x's 64 MiB per-TC VMEM.
    c_bytes = jnp.dtype(compute_dtype).itemsize
    o_bytes = jnp.dtype(out_dtype).itemsize
    tile_bytes = (2 * tm * K * c_bytes          # patch tiles (double-buffered)
                  + 2 * K * D * c_bytes         # resident weight (2 bufs)
                  + 2 * D * 4                   # resident bias
                  + 2 * tm * D * o_bytes)       # output tiles (double-buffered)
    vmem_limit = min(int(tile_bytes) + (16 << 20), 48 << 20)

    cost = pl.CostEstimate(
        flops=2 * M * K * D,
        transcendentals=0,
        bytes_accessed=(M * K * c_bytes          # patches, read once
                        + K * D * c_bytes        # weight, read once (resident)
                        + D * 4                  # bias, read once
                        + M * D * o_bytes),      # output, written once
    )

    out = pl.pallas_call(
        _patch_embed_kernel,
        out_shape=jax.ShapeDtypeStruct((M, D), out_dtype),
        grid_spec=pltpu.PrefetchScalarGridSpec(
            num_scalar_prefetch=0,
            grid=grid,
            in_specs=[
                pl.BlockSpec((tm, K), lambda i: (i, 0)),   # patch tile (streamed)
                pl.BlockSpec((K, D), lambda i: (0, 0)),    # weight (resident)
                pl.BlockSpec((1, D), lambda i: (0, 0)),    # bias (resident)
            ],
            out_specs=pl.BlockSpec((tm, D), lambda i: (i, 0)),
        ),
        compiler_params=pltpu.CompilerParams(
            dimension_semantics=("parallel",),
            vmem_limit_bytes=vmem_limit,
            allow_input_fusion=[True, False, False],
        ),
        cost_estimate=cost,
    )(patches, w_mat, b_mat)

    return out.reshape(B, N, D)


if __name__ == "__main__":
    # Small shapes consistent with the module: B=2, C=3 (fixed by Conv2d(3, D)),
    # H=W=16, patch_size=4 -> N=16 patches, D=32 embedding dim.
    B, C, H, W = 2, 3, 16, 16
    P, D = 4, 32

    key = jax.random.PRNGKey(0)
    kx, kw, kb = jax.random.split(key, 3)

    x = jax.random.normal(kx, (B, C, H, W), dtype=jnp.float32)
    weight = jax.random.normal(kw, (D, C, P, P), dtype=jnp.float32) * 0.05
    bias = jax.random.normal(kb, (D,), dtype=jnp.float32) * 0.01

    y = make_patch_forward(x, weight, bias, P)   # bf16 output (default)
    y = jax.block_until_ready(y)

    # Reference: strided conv on the same bf16-rounded operands the kernel sees.
    xq = x.astype(jnp.bfloat16).astype(jnp.float32)
    wq = weight.astype(jnp.bfloat16).astype(jnp.float32)
    ref = jax.lax.conv_general_dilated(
        xq, wq, window_strides=(P, P), padding="VALID",
        dimension_numbers=("NCHW", "OIHW", "NCHW"),
        precision=jax.lax.Precision.HIGHEST,
    ) + bias.reshape(1, D, 1, 1)
    ref = ref.reshape(B, D, -1).transpose(0, 2, 1)  # (B, N, D)

    assert y.shape == (B, (H // P) * (W // P), D)
    err = float(jnp.max(jnp.abs(y.astype(jnp.float32) - ref)))
    assert jnp.allclose(y.astype(jnp.float32), ref, atol=3e-2, rtol=3e-2), err

    print("KERNEL_OK")
</pallas_src>

<mosaic_0001>
module attributes {stable_mosaic.version = 11 : i64} {
  func.func @_patch_embed_kernel(%arg0: i32, %arg1: memref<32x48xbf16, #tpu.memory_space<vmem>>, %arg2: memref<48x32xbf16, #tpu.memory_space<vmem>>, %arg3: memref<1x32xf32, #tpu.memory_space<vmem>>, %arg4: memref<32x32xbf16, #tpu.memory_space<vmem>>) attributes {dimension_semantics = [#tpu.dimension_semantics<parallel>], iteration_bounds = array<i64: 1>, scalar_prefetch = 0 : i64, scratch_operands = 0 : i64, tpu.core_type = #tpu.core_type<tc>, window_params = [{transform_indices = @transform_0, window_bounds = array<i64: 32, 48>}, {pipeline_mode = #tpu.pipeline_mode<synchronous>, transform_indices = @transform_1, window_bounds = array<i64: 48, 32>}, {pipeline_mode = #tpu.pipeline_mode<synchronous>, transform_indices = @transform_2, window_bounds = array<i64: 1, 32>}, {transform_indices = @transform_3, window_bounds = array<i64: 32, 32>}]} {
    %c0 = arith.constant 0 : index
    %c0_0 = arith.constant 0 : index
    %0 = vector.load %arg1[%c0, %c0_0] : memref<32x48xbf16, #tpu.memory_space<vmem>>, vector<32x48xbf16>
    %c0_1 = arith.constant 0 : index
    %c0_2 = arith.constant 0 : index
    %1 = vector.load %arg2[%c0_1, %c0_2] : memref<48x32xbf16, #tpu.memory_space<vmem>>, vector<48x32xbf16>
    %cst = arith.constant dense<0.000000e+00> : vector<32x32xf32>
    %2 = tpu.matmul %0, %1, %cst {dimension_numbers = #tpu.dot_dimension_numbers<[1], [0], [0], [1], [0, 0, 1, 1], [], []>} : vector<32x48xbf16>, vector<48x32xbf16>, vector<32x32xf32> -> vector<32x32xf32>
    %c0_3 = arith.constant 0 : index
    %c0_4 = arith.constant 0 : index
    %3 = vector.load %arg3[%c0_3, %c0_4] : memref<1x32xf32, #tpu.memory_space<vmem>>, vector<1x32xf32>
    %4 = vector.broadcast %3 : vector<1x32xf32> to vector<32x32xf32>
    %5 = arith.addf %2, %4 : vector<32x32xf32>
    %6 = arith.truncf %5 : vector<32x32xf32> to vector<32x32xbf16>
    %c0_5 = arith.constant 0 : index
    %c0_6 = arith.constant 0 : index
    %7 = vector.load %arg4[%c0_5, %c0_6] : memref<32x32xbf16, #tpu.memory_space<vmem>>, vector<32x32xbf16>
    tpu.vector_store %arg4[%c0_5, %c0_6], %6 {strides = array<i32>} : memref<32x32xbf16, #tpu.memory_space<vmem>>, vector<32x32xbf16>,
    return
  }
  func.func @transform_0(%arg0: i32) -> (i32, i32) {
    %c0_i32 = arith.constant 0 : i32
    %c0_i32_0 = arith.constant 0 : i32
    return %arg0, %c0_i32 : i32, i32
  }
  func.func @transform_1(%arg0: i32) -> (i32, i32) {
    %c0_i32 = arith.constant 0 : i32
    %c0_i32_0 = arith.constant 0 : i32
    %c0_i32_1 = arith.constant 0 : i32
    return %c0_i32, %c0_i32_0 : i32, i32
  }
  func.func @transform_2(%arg0: i32) -> (i32, i32) {
    %c0_i32 = arith.constant 0 : i32
    %c0_i32_0 = arith.constant 0 : i32
    %c0_i32_1 = arith.constant 0 : i32
    return %c0_i32, %c0_i32_0 : i32, i32
  }
  func.func @transform_3(%arg0: i32) -> (i32, i32) {
    %c0_i32 = arith.constant 0 : i32
    %c0_i32_0 = arith.constant 0 : i32
    return %arg0, %c0_i32 : i32, i32
  }
}

</mosaic_0001>

<llo_original>
// kernel: tpu_custom_call.1
$region0: #{tpu_custom_call.1}
  #allocation0 [shape = 'u32[]', space=smem, size = 0x4, offset = 0x4, fixed_abs, tag = 'smem constant byte address 0x4 - core index']
  #allocation1 [shape = 'u32[144,128]{1,0:T(1,128)}', space=vmem, size = 0x12000, scoped, tag = 'internal scratch']
  %s0 = inlined_call_operand.vmem [shape: bf16[32,48], index: 0, kind: input, shape index: {}]
  %s1 = inlined_call_operand.vmem [shape: bf16[48,32], index: 1, kind: input, shape index: {}]
  %s2 = inlined_call_operand.vmem [shape: f32[1,32], index: 2, kind: input, shape index: {}]
  %s3 = inlined_call_operand.hbm [shape: bf16[32,32], index: 3, kind: output, shape index: {}]
  %s4 = sld [smem:[#allocation0]]
  $region22: #{tpu_custom_call.1} parent=0
    _
  %s6 = ssub.s32 1, %s4
  %s7 = scalar_select 0, %s6, %s4
  $region1: #{tpu_custom_call.1} parent=0
    #allocation2 [shape = 'u8[8192]{0}', space=vmem, size = 0x2000, scoped, tag = 'output window, operand 0, single buffered']
    #allocation3 [shape = 's32[1]{0}', space=sflag, size = 0x4, scoped, tag = 'scoped memory for tpu_custom_call.1']
    %8 = vsyncpa [#allocation3], 0
    // Predicated region
    $region2: #{tpu_custom_call.1} parent=1 // pred_check
      _
    $region3: #{tpu_custom_call.1} parent=1 // pred_check_branch
      %10 = sbr.rel (0) target = $region5
    $region4: #{tpu_custom_call.1} parent=1 // pred_region
      _
    $region5: #{tpu_custom_call.1} parent=1 // pred_fallthru
      _
    // Predicated region
    $region6: #{tpu_custom_call.1} parent=1 // pred_check
      _
    $region7: #{tpu_custom_call.1} parent=1 // pred_check_branch
      %12 = sbr.rel (0) target = $region9
    $region8: #{tpu_custom_call.1} parent=1 // pred_region
      _
    $region9: #{tpu_custom_call.1} parent=1 // pred_fallthru
      _
    // Predicated region
    $region10: #{tpu_custom_call.1} parent=1 // pred_check
      _
    $region11: #{tpu_custom_call.1} parent=1 // pred_check_branch
      %14 = sbr.rel (0) target = $region13
    $region12: #{tpu_custom_call.1} parent=1 // pred_region
      _
    $region13: #{tpu_custom_call.1} parent=1 // pred_fallthru
      _
    %v16 = vld [vmem:[%s0] sm:$0xf]
    %v17 = vld [vmem:[%s0 + $0x4] sm:$0xf]
    %v18 = vld [vmem:[%s0 + $0x8] sm:$0xf]
    %v19 = vld [vmem:[%s0 + $0xc] sm:$0xf]
    %v20 = vld [vmem:[%s1] sm:$0xf]
    %v21 = vld [vmem:[%s1 + $0x4] sm:$0xf]
    %v22 = vld [vmem:[%s1 + $0x8] sm:$0xf]
    %v23 = vld [vmem:[%s1 + $0xc] sm:$0xf]
    %v24 = vld [vmem:[%s1 + $0x10] sm:$0xf]
    %v25 = vld [vmem:[%s1 + $0x14] sm:$0xf]
    %v26 = vld [vmem:[%s2] sm:$0x1]
    %v28 = vlaneseq
    %v29 = vshrl.u32 %v28, 7
    %v30 = vsub.s32 0, %v29
    %v31 = vrot.slane %v26, %v30
    %v37 = vunpack.c.l.b16 %v16
    %v38 = vunpack.c.l.b16 %v17
    %v39 = vunpack.c.l.b16 %v18
    %v40 = vunpack.c.l.b16 %v19
    %v41 = vpack.c.b16 %v38, %v37
    %v42 = vpack.c.b16 %v40, %v39
    %v49 = vunpack.c.l.b16 %v20
    %v50 = vunpack.c.l.b16 %v21
    %v51 = vunpack.c.l.b16 %v22
    %v52 = vunpack.c.l.b16 %v23
    %v53 = vunpack.c.l.b16 %v24
    %v54 = vunpack.c.l.b16 %v25
    %v55 = vpack.c.b16 %v50, %v49
    %v56 = vpack.c.b16 %v52, %v51
    %v57 = vpack.c.b16 %v54, %v53
    %vm61 = vcmask 392192
    %v63 = vsel %vm61, %v41, 0
    %v66 = vsel %vm61, %v42, 0
    %68 = vmatprep.subr.bf16.mxu0 0
    %69 = vmatpush1.bf16.msra.mxu0 %v55
    %70 = vmatprep.subr.bf16.mxu0 0
    %71 = vmatpush1.bf16.msra.mxu0 %v56
    %72 = vmatprep.subr.bf16.mxu0 0
    %73 = vmatpush1.bf16.msra.mxu0 %v57
    %74 = vmatprep.subr.bf16.mxu0 0
    %75 = vmatpush1.bf16.msra.mxu0 0
    %76 = vmatprep.subr.bf16.mxu0 0
    %77 = vmatpush1.bf16.msra.mxu0 0
    %78 = vmatprep.subr.bf16.mxu0 0
    %79 = vmatpush1.bf16.msra.mxu0 0
    %80 = vmatprep.subr.bf16.mxu0 0
    %81 = vmatpush1.bf16.msra.mxu0 0
    %82 = vmatprep.subr.bf16.mxu0 0
    %83 = vmatpush1.bf16.msra.mxu0 0
    %84 = vmatprep.subr.bf16.mxu0 0
    %85 = vmatpush1.bf16.msra.mxu0 0
    %86 = vmatprep.subr.bf16.mxu0 0
    %87 = vmatpush1.bf16.msra.mxu0 0
    %88 = vmatprep.subr.bf16.mxu0 0
    %89 = vmatpush1.bf16.msra.mxu0 0
    %90 = vmatprep.subr.bf16.mxu0 0
    %91 = vmatpush1.bf16.msra.mxu0 0
    %92 = vmatprep.subr.bf16.mxu0 0
    %93 = vmatpush1.bf16.msra.mxu0 0
    %94 = vmatprep.subr.bf16.mxu0 0
    %95 = vmatpush1.bf16.msra.mxu0 0
    %96 = vmatprep.subr.bf16.mxu0 0
    %97 = vmatpush1.bf16.msra.mxu0 0
    %98 = vmatprep.subr.bf16.mxu0 0
    %99 = vmatpush1.bf16.msra.mxu0 0
    %100 = vmatprep.mubr.bf16.mxu0 0
    %101 = vmatmul.mubr.bf16.gmra.mrb[0].mxu0 %v63
    %v102 = vpop.f32.mrb[0].mxu0
    %v103 = vadd.f32 %v31, %v102
    %v104 = vpop.f32.mrb[0].mxu0
    %v105 = vpop.f32.mrb[0].mxu0
    %v106 = vadd.f32 %v31, %v105
    %v107 = vpop.f32.mrb[0].mxu0
    %108 = vmatprep.mubr.bf16.mxu0 0
    %109 = vmatmul.mubr.bf16.gmra.mrb[0].mxu0 %v66
    %v110 = vpop.f32.mrb[0].mxu0
    %v111 = vadd.f32 %v31, %v110
    %v112 = vpop.f32.mrb[0].mxu0
    %v113 = vpop.f32.mrb[0].mxu0
    %v114 = vadd.f32 %v31, %v113
    %v115 = vpop.f32.mrb[0].mxu0
    %116 = vdwg.mxu0
    %v117 = vpack.c.bf16 %v106, %v103
    %v118 = vpack.c.bf16 %v114, %v111
    %v121 = vunpack.c.l.b16 %v117
    %v122 = vunpack.c.h.b16 %v117
    %v123 = vunpack.c.l.b16 %v118
    %v124 = vunpack.c.h.b16 %v118
    %v125 = vpack.c.b16 %v121, %v121
    %v126 = vpack.c.b16 %v122, %v122
    %v127 = vpack.c.b16 %v123, %v123
    %v128 = vpack.c.b16 %v124, %v124
    %vm133 = vcmask 257024
    %134 = vst.msk [vmem:[#allocation2] sm:$0xf] %vm133, %v125
    %135 = vst.msk [vmem:[#allocation2 + $0x4] sm:$0xf] %vm133, %v126
    %136 = vst.msk [vmem:[#allocation2 + $0x8] sm:$0xf] %vm133, %v127
    %137 = vst.msk [vmem:[#allocation2 + $0xc] sm:$0xf] %vm133, %v128
    // Predicated region
    $region14: #{tpu_custom_call.1} parent=1 // pred_check
      _
    $region15: #{tpu_custom_call.1} parent=1 // pred_check_branch
      %139 = sbr.rel (0) target = $region17
    $region16: #{tpu_custom_call.1} parent=1 // pred_region
      %s141 = ssub.s32 256, 256
      %142 = vsyncadd [#allocation3], %s141
      %s143 = sshll.u32 [#allocation2], 4
      %s144 = int_to_ptr.vmem [resolvable:$true] %s143
      %149 = dma.vmem_to_hbm [thread:$0]  %s144, 256, %s3, [#allocation3], 64, 64, 4
    $region17: #{tpu_custom_call.1} parent=1 // pred_fallthru
      _
    // Predicated region
    $region18: #{tpu_custom_call.1} parent=1 // pred_check
      _
    $region19: #{tpu_custom_call.1} parent=1 // pred_check_branch
      %151 = sbr.rel (0) target = $region21
    $region20: #{tpu_custom_call.1} parent=1 // pred_region
      %152 = dma.done [#allocation3], 256
    $region21: #{tpu_custom_call.1} parent=1 // pred_fallthru
      _
    %153 = vsyncpa [#allocation3], 1

</llo_original>
